<compile_context>
chip_gen: v5e
topology: v5e:2x2
jax: 0.10.0
libtpu: 0.0.40
codegen_flags: <defaults>
</compile_context>

<pallas_src>
import jax
import jax.numpy as jnp
from jax.experimental import pallas as pl
from jax.experimental.pallas import tpu as pltpu


LN_EPS = 1e-5  # nn.LayerNorm default


# ----------------------------- Pallas kernel ------------------------------- #
def ln_linear_kernel(x_ref, gamma_ref, beta_ref, w_ref, b_ref, o_ref):
    # x_ref:     (TB, D)       rows = batch tile
    # gamma/beta:(1,  D)       LayerNorm affine
    # w_ref:     (D,  NP)      Linear weight, output dim zero-padded to 128*k
    # b_ref:     (1,  NP)      Linear bias, zero-padded
    # o_ref:     (TB, NP)      lane-dense output tile
    x = x_ref[...]
    d = x.shape[1]
    inv_d = jnp.float32(1.0 / d)

    # LayerNorm over the last dim, stable (centered) variance.
    mean = jnp.sum(x, axis=1, keepdims=True) * inv_d
    xc = x - mean
    var = jnp.sum(xc * xc, axis=1, keepdims=True) * inv_d
    inv_std = jax.lax.rsqrt(var + jnp.float32(LN_EPS))
    y = xc * inv_std * gamma_ref[...] + beta_ref[...]

    # Linear on the MXU, f32 accumulation, unmasked lane-dense store.
    o_ref[...] = (
        jnp.dot(y, w_ref[...], preferred_element_type=jnp.float32) + b_ref[...]
    )


# ------------------------------- wrapper ------------------------------------ #
def _round_up(v, m):
    return (v + m - 1) // m * m


def layernorm_linear_pallas(x, gamma, beta, w, b, *, max_block_rows=128):
    """Fused LayerNorm + Linear.  x: (B, D) -> (B, n_out)."""
    B, D = x.shape
    n_out = w.shape[1]

    # Pad the output dim to a multiple of 128 lanes (zeros -> padded columns
    # are exactly 0 and are sliced off below).
    NP = _round_up(n_out, 128)
    # Row tile: multiple of 8 sublanes, capped at max_block_rows.
    TB = min(max_block_rows, _round_up(B, 8))
    BP = _round_up(B, TB)

    x_p = jnp.pad(x, ((0, BP - B), (0, 0)))
    w_p = jnp.pad(w, ((0, 0), (0, NP - n_out)))
    b_p = jnp.pad(b, ((0, NP - n_out),)).reshape(1, NP)
    gamma2 = gamma.reshape(1, D)
    beta2 = beta.reshape(1, D)

    grid = (BP // TB,)
    cost = pl.CostEstimate(
        flops=2 * BP * D * NP + 8 * BP * D,
        transcendentals=BP,
        bytes_accessed=4 * (BP * D + D * NP + BP * NP + 2 * D + NP),
    )

    out = pl.pallas_call(
        ln_linear_kernel,
        out_shape=jax.ShapeDtypeStruct((BP, NP), jnp.float32),
        grid_spec=pltpu.PrefetchScalarGridSpec(
            num_scalar_prefetch=0,
            grid=grid,
            in_specs=[
                pl.BlockSpec((TB, D), lambda i: (i, 0)),   # x rows, pipelined
                pl.BlockSpec((1, D), lambda i: (0, 0)),    # gamma (resident)
                pl.BlockSpec((1, D), lambda i: (0, 0)),    # beta
                pl.BlockSpec((D, NP), lambda i: (0, 0)),   # W (resident)
                pl.BlockSpec((1, NP), lambda i: (0, 0)),   # bias
            ],
            out_specs=pl.BlockSpec((TB, NP), lambda i: (i, 0)),
        ),
        compiler_params=pltpu.CompilerParams(
            dimension_semantics=("parallel",),      # rows are independent
            vmem_limit_bytes=32 * 1024 * 1024,      # safe on v5e/v6e/v7x
        ),
        cost_estimate=cost,
    )(x_p, gamma2, beta2, w_p, b_p)

    return out[:B, :n_out]


# -------------------------- model-level forward ----------------------------- #
def dinov2_keypoint_head(cls_token, params):
    """head = LayerNorm(hidden) + Linear(hidden, num_keypoints*2)."""
    return layernorm_linear_pallas(
        cls_token, params["ln_gamma"], params["ln_beta"], params["w"], params["b"]
    )


def repeat_channels(x):
    """x.repeat(1, 3, 1, 1) in PyTorch semantics (NCHW)."""
    return jnp.tile(x, (1, 3, 1, 1))


# --------------------------- pure-JAX reference ----------------------------- #
def head_ref(cls_token, params):
    x = cls_token
    mean = jnp.mean(x, axis=-1, keepdims=True)
    var = jnp.mean((x - mean) ** 2, axis=-1, keepdims=True)
    y = (x - mean) / jnp.sqrt(var + LN_EPS)
    y = y * params["ln_gamma"] + params["ln_beta"]
    return (
        jnp.dot(y, params["w"], precision=jax.lax.Precision.HIGHEST) + params["b"]
    )


# --------------------------------- main ------------------------------------- #
if __name__ == "__main__":
    BATCH = 2
    IMG_C, IMG_H, IMG_W = 1, 16, 16     # grayscale image, repeated to 3 ch.
    SEQ = 8                             # stand-in token count (cls + patches)
    HIDDEN = 768                        # dinov2-base hidden size
    NUM_KEYPOINTS = 68
    N_OUT = NUM_KEYPOINTS * 2           # 136 -> padded to 256 lanes in-kernel

    key = jax.random.PRNGKey(0)
    kx, kh, kg, kb, kw, kbias = jax.random.split(key, 6)

    x = jax.random.normal(kx, (BATCH, IMG_C, IMG_H, IMG_W), jnp.float32)
    x3 = repeat_channels(x)                       # x.repeat(1, 3, 1, 1)
    assert x3.shape == (BATCH, 3, IMG_H, IMG_W)

    # TODO(synk): pretrained DINOv2 backbone (AutoModel.from_pretrained) has no
    # Pallas equivalent (pretrained weights, full ViT); deterministic stand-in
    # features of the correct shape are used so the head kernel can run.
    last_hidden_state = jax.random.normal(kh, (BATCH, SEQ, HIDDEN), jnp.float32)
    cls_token = last_hidden_state[:, 0]           # (BATCH, HIDDEN)

    params = {
        # LayerNorm affine (perturbed from PyTorch's ones/zeros init to
        # actually exercise the gamma/beta path).
        "ln_gamma": 1.0 + 0.1 * jax.random.normal(kg, (HIDDEN,), jnp.float32),
        "ln_beta": 0.1 * jax.random.normal(kb, (HIDDEN,), jnp.float32),
        # Linear(hidden -> num_keypoints*2)
        "w": 0.05 * jax.random.normal(kw, (HIDDEN, N_OUT), jnp.float32),
        "b": 0.05 * jax.random.normal(kbias, (N_OUT,), jnp.float32),
    }

    out = jax.block_until_ready(dinov2_keypoint_head(cls_token, params))
    ref = jax.block_until_ready(head_ref(cls_token, params))

    assert out.shape == (BATCH, N_OUT), out.shape
    assert jnp.allclose(out, ref, rtol=2e-4, atol=2e-4), (
        float(jnp.max(jnp.abs(out - ref))))

    print("KERNEL_OK")
</pallas_src>

<mosaic_0001>
module attributes {stable_mosaic.version = 11 : i64} {
  func.func @ln_linear_kernel(%arg0: i32, %arg1: memref<8x768xf32, #tpu.memory_space<vmem>>, %arg2: memref<1x768xf32, #tpu.memory_space<vmem>>, %arg3: memref<1x768xf32, #tpu.memory_space<vmem>>, %arg4: memref<768x256xf32, #tpu.memory_space<vmem>>, %arg5: memref<1x256xf32, #tpu.memory_space<vmem>>, %arg6: memref<8x256xf32, #tpu.memory_space<vmem>>) attributes {dimension_semantics = [#tpu.dimension_semantics<parallel>], iteration_bounds = array<i64: 1>, scalar_prefetch = 0 : i64, scratch_operands = 0 : i64, tpu.core_type = #tpu.core_type<tc>, window_params = [{transform_indices = @transform_0, window_bounds = array<i64: 8, 768>}, {pipeline_mode = #tpu.pipeline_mode<synchronous>, transform_indices = @transform_1, window_bounds = array<i64: 1, 768>}, {pipeline_mode = #tpu.pipeline_mode<synchronous>, transform_indices = @transform_2, window_bounds = array<i64: 1, 768>}, {pipeline_mode = #tpu.pipeline_mode<synchronous>, transform_indices = @transform_3, window_bounds = array<i64: 768, 256>}, {pipeline_mode = #tpu.pipeline_mode<synchronous>, transform_indices = @transform_4, window_bounds = array<i64: 1, 256>}, {transform_indices = @transform_5, window_bounds = array<i64: 8, 256>}]} {
    %c0 = arith.constant 0 : index
    %c0_0 = arith.constant 0 : index
    %0 = vector.load %arg1[%c0, %c0_0] : memref<8x768xf32, #tpu.memory_space<vmem>>, vector<8x768xf32>
    %cst = arith.constant dense<0.000000e+00> : vector<8xf32>
    %1 = vector.multi_reduction <add>, %0, %cst [1] : vector<8x768xf32> to vector<8xf32>
    %2 = vector.shape_cast %1 : vector<8xf32> to vector<8x1xf32>
    %cst_1 = arith.constant 0.00130208337 : f32
    %3 = vector.broadcast %cst_1 : f32 to vector<8x1xf32>
    %4 = arith.mulf %2, %3 : vector<8x1xf32>
    %5 = vector.broadcast %4 : vector<8x1xf32> to vector<8x768xf32>
    %6 = arith.subf %0, %5 : vector<8x768xf32>
    %7 = arith.mulf %6, %6 : vector<8x768xf32>
    %cst_2 = arith.constant dense<0.000000e+00> : vector<8xf32>
    %8 = vector.multi_reduction <add>, %7, %cst_2 [1] : vector<8x768xf32> to vector<8xf32>
    %9 = vector.shape_cast %8 : vector<8xf32> to vector<8x1xf32>
    %cst_3 = arith.constant 0.00130208337 : f32
    %10 = vector.broadcast %cst_3 : f32 to vector<8x1xf32>
    %11 = arith.mulf %9, %10 : vector<8x1xf32>
    %cst_4 = arith.constant 9.99999974E-6 : f32
    %12 = vector.broadcast %cst_4 : f32 to vector<8x1xf32>
    %13 = arith.addf %11, %12 : vector<8x1xf32>
    %14 = math.rsqrt %13 : vector<8x1xf32>
    %15 = vector.broadcast %14 : vector<8x1xf32> to vector<8x768xf32>
    %16 = arith.mulf %6, %15 : vector<8x768xf32>
    %c0_5 = arith.constant 0 : index
    %c0_6 = arith.constant 0 : index
    %17 = vector.load %arg2[%c0_5, %c0_6] : memref<1x768xf32, #tpu.memory_space<vmem>>, vector<1x768xf32>
    %18 = vector.broadcast %17 : vector<1x768xf32> to vector<8x768xf32>
    %19 = arith.mulf %16, %18 : vector<8x768xf32>
    %c0_7 = arith.constant 0 : index
    %c0_8 = arith.constant 0 : index
    %20 = vector.load %arg3[%c0_7, %c0_8] : memref<1x768xf32, #tpu.memory_space<vmem>>, vector<1x768xf32>
    %21 = vector.broadcast %20 : vector<1x768xf32> to vector<8x768xf32>
    %22 = arith.addf %19, %21 : vector<8x768xf32>
    %c0_9 = arith.constant 0 : index
    %c0_10 = arith.constant 0 : index
    %23 = vector.load %arg4[%c0_9, %c0_10] : memref<768x256xf32, #tpu.memory_space<vmem>>, vector<768x256xf32>
    %cst_11 = arith.constant dense<0.000000e+00> : vector<8x256xf32>
    %24 = tpu.matmul %22, %23, %cst_11 {dimension_numbers = #tpu.dot_dimension_numbers<[1], [0], [0], [1], [0, 0, 1, 1], [], []>} : vector<8x768xf32>, vector<768x256xf32>, vector<8x256xf32> -> vector<8x256xf32>
    %c0_12 = arith.constant 0 : index
    %c0_13 = arith.constant 0 : index
    %25 = vector.load %arg5[%c0_12, %c0_13] : memref<1x256xf32, #tpu.memory_space<vmem>>, vector<1x256xf32>
    %26 = vector.broadcast %25 : vector<1x256xf32> to vector<8x256xf32>
    %27 = arith.addf %24, %26 : vector<8x256xf32>
    %c0_14 = arith.constant 0 : index
    %c0_15 = arith.constant 0 : index
    %28 = vector.load %arg6[%c0_14, %c0_15] : memref<8x256xf32, #tpu.memory_space<vmem>>, vector<8x256xf32>
    tpu.vector_store %arg6[%c0_14, %c0_15], %27 {strides = array<i32>} : memref<8x256xf32, #tpu.memory_space<vmem>>, vector<8x256xf32>,
    return
  }
  func.func @transform_0(%arg0: i32) -> (i32, i32) {
    %c0_i32 = arith.constant 0 : i32
    %c0_i32_0 = arith.constant 0 : i32
    return %arg0, %c0_i32 : i32, i32
  }
  func.func @transform_1(%arg0: i32) -> (i32, i32) {
    %c0_i32 = arith.constant 0 : i32
    %c0_i32_0 = arith.constant 0 : i32
    %c0_i32_1 = arith.constant 0 : i32
    return %c0_i32, %c0_i32_0 : i32, i32
  }
  func.func @transform_2(%arg0: i32) -> (i32, i32) {
    %c0_i32 = arith.constant 0 : i32
    %c0_i32_0 = arith.constant 0 : i32
    %c0_i32_1 = arith.constant 0 : i32
    return %c0_i32, %c0_i32_0 : i32, i32
  }
  func.func @transform_3(%arg0: i32) -> (i32, i32) {
    %c0_i32 = arith.constant 0 : i32
    %c0_i32_0 = arith.constant 0 : i32
    %c0_i32_1 = arith.constant 0 : i32
    return %c0_i32, %c0_i32_0 : i32, i32
  }
  func.func @transform_4(%arg0: i32) -> (i32, i32) {
    %c0_i32 = arith.constant 0 : i32
    %c0_i32_0 = arith.constant 0 : i32
    %c0_i32_1 = arith.constant 0 : i32
    return %c0_i32, %c0_i32_0 : i32, i32
  }
  func.func @transform_5(%arg0: i32) -> (i32, i32) {
    %c0_i32 = arith.constant 0 : i32
    %c0_i32_0 = arith.constant 0 : i32
    return %arg0, %c0_i32 : i32, i32
  }
}

</mosaic_0001>

<llo_original>
// kernel: tpu_custom_call.1
$region0: #{tpu_custom_call.1}
  #allocation0 [shape = 'u32[]', space=smem, size = 0x4, offset = 0x4, fixed_abs, tag = 'smem constant byte address 0x4 - core index']
  #allocation1 [shape = 'u32[72,128]{1,0:T(1,128)}', space=vmem, size = 0x9000, scoped, tag = 'internal scratch']
  %s0 = inlined_call_operand.hbm [shape: f32[8,768], index: 0, kind: input, shape index: {}]
  %s1 = inlined_call_operand.hbm [shape: f32[1,768], index: 1, kind: input, shape index: {}]
  %s2 = inlined_call_operand.hbm [shape: f32[1,768], index: 2, kind: input, shape index: {}]
  %s3 = inlined_call_operand.hbm [shape: f32[768,256], index: 3, kind: input, shape index: {}]
  %s4 = inlined_call_operand.vmem [shape: f32[1,256], index: 4, kind: input, shape index: {}]
  %s5 = inlined_call_operand.hbm [shape: f32[8,256], index: 5, kind: output, shape index: {}]
  %s6 = sld [smem:[#allocation0]]
  $region46: #{tpu_custom_call.1} parent=0
    _
  %s8 = ssub.s32 1, %s6
  %s9 = scalar_select 0, %s8, %s6
  $region1: #{tpu_custom_call.1} parent=0
    #allocation2 [shape = 'u8[24576]{0}', space=vmem, size = 0x6000, scoped, tag = 'input window, operand 0, single buffered']
    #allocation3 [shape = 's32[1]{0}', space=sflag, size = 0x4, scoped, tag = 'scoped memory for tpu_custom_call.1']
    #allocation4 [shape = 's32[1]{0}', space=sflag, size = 0x4, scoped, tag = 'scoped memory for tpu_custom_call.1']
    #allocation5 [shape = 'u8[3072]{0}', space=vmem, size = 0xc00, scoped, tag = 'input window, operand 1, single buffered']
    #allocation6 [shape = 's32[1]{0}', space=sflag, size = 0x4, scoped, tag = 'scoped memory for tpu_custom_call.1']
    #allocation7 [shape = 'u8[3072]{0}', space=vmem, size = 0xc00, scoped, tag = 'input window, operand 2, single buffered']
    #allocation8 [shape = 'u8[786432]{0}', space=vmem, size = 0xc0000, scoped, tag = 'input window, operand 3, single buffered']
    #allocation9 [shape = 's32[1]{0}', space=sflag, size = 0x4, scoped, tag = 'scoped memory for tpu_custom_call.1']
    #allocation10 [shape = 'u8[8192]{0}', space=vmem, size = 0x2000, scoped, tag = 'output window, operand 0, single buffered']
    %10 = vsyncpa [#allocation3], 0
    %11 = vsyncpa [#allocation6], 0
    %12 = vsyncpa [#allocation9], 0
    %13 = vsyncpa [#allocation4], 0
    // Predicated region
    $region2: #{tpu_custom_call.1} parent=1 // pred_check
      _
    $region3: #{tpu_custom_call.1} parent=1 // pred_check_branch
      %15 = sbr.rel (0) target = $region5
    $region4: #{tpu_custom_call.1} parent=1 // pred_region
      %17 = vsyncadd [#allocation3], 0
      %s19 = sshll.u32 %s0, 4
      %s20 = int_to_ptr.hbm [resolvable:$true] %s19
      %s21 = sshll.u32 [#allocation2], 4
      %s22 = int_to_ptr.vmem [resolvable:$true] %s21
      %24 = dma.hbm_to_vmem [thread:$0]  %s20, 768, %s22, [#allocation3]
    $region5: #{tpu_custom_call.1} parent=1 // pred_fallthru
      _
    // Predicated region
    $region6: #{tpu_custom_call.1} parent=1 // pred_check
      _
    $region7: #{tpu_custom_call.1} parent=1 // pred_check_branch
      %26 = sbr.rel (0) target = $region9
    $region8: #{tpu_custom_call.1} parent=1 // pred_region
      %28 = vsyncadd [#allocation6], 0
      %s30 = sshll.u32 %s1, 4
      %s31 = int_to_ptr.hbm [resolvable:$true] %s30
      %s32 = sshll.u32 [#allocation5], 4
      %s33 = int_to_ptr.vmem [resolvable:$true] %s32
      %35 = dma.hbm_to_vmem [thread:$0]  %s31, 96, %s33, [#allocation6]
    $region9: #{tpu_custom_call.1} parent=1 // pred_fallthru
      _
    // Predicated region
    $region10: #{tpu_custom_call.1} parent=1 // pred_check
      _
    $region11: #{tpu_custom_call.1} parent=1 // pred_check_branch
      %37 = sbr.rel (0) target = $region13
    $region12: #{tpu_custom_call.1} parent=1 // pred_region
      %39 = vsyncadd [#allocation6], 0
      %s41 = sshll.u32 %s2, 4
      %s42 = int_to_ptr.hbm [resolvable:$true] %s41
      %s43 = sshll.u32 [#allocation7], 4
      %s44 = int_to_ptr.vmem [resolvable:$true] %s43
      %46 = dma.hbm_to_vmem [thread:$0]  %s42, 96, %s44, [#allocation6]
    $region13: #{tpu_custom_call.1} parent=1 // pred_fallthru
      _
    // Predicated region
    $region14: #{tpu_custom_call.1} parent=1 // pred_check
      _
    $region15: #{tpu_custom_call.1} parent=1 // pred_check_branch
      %48 = sbr.rel (0) target = $region17
    $region16: #{tpu_custom_call.1} parent=1 // pred_region
      %50 = vsyncadd [#allocation9], 0
      %s51 = sshll.u32 %s3, 4
      %s52 = int_to_ptr.hbm [resolvable:$true] %s51
      %s53 = sshll.u32 [#allocation8], 4
      %s54 = int_to_ptr.vmem [resolvable:$true] %s53
      %59 = dma.hbm_to_vmem [thread:$0]  %s52, 24576, %s54, [#allocation9], 256, 256, 16
    $region17: #{tpu_custom_call.1} parent=1 // pred_fallthru
      _
    // Predicated region
    $region18: #{tpu_custom_call.1} parent=1 // pred_check
      _
    $region19: #{tpu_custom_call.1} parent=1 // pred_check_branch
      %61 = sbr.rel (0) target = $region21
    $region20: #{tpu_custom_call.1} parent=1 // pred_region
      _
    $region21: #{tpu_custom_call.1} parent=1 // pred_fallthru
      _
    // Predicated region
    $region22: #{tpu_custom_call.1} parent=1 // pred_check
      _
    $region23: #{tpu_custom_call.1} parent=1 // pred_check_branch
      %63 = sbr.rel (0) target = $region25
    $region24: #{tpu_custom_call.1} parent=1 // pred_region
      %65 = dma.done [#allocation3], 768
    $region25: #{tpu_custom_call.1} parent=1 // pred_fallthru
      _
    // Predicated region
    $region26: #{tpu_custom_call.1} parent=1 // pred_check
      _
    $region27: #{tpu_custom_call.1} parent=1 // pred_check_branch
      %67 = sbr.rel (0) target = $region29
    $region28: #{tpu_custom_call.1} parent=1 // pred_region
      %69 = dma.done [#allocation6], 96
    $region29: #{tpu_custom_call.1} parent=1 // pred_fallthru
      _
    // Predicated region
    $region30: #{tpu_custom_call.1} parent=1 // pred_check
      _
    $region31: #{tpu_custom_call.1} parent=1 // pred_check_branch
      %71 = sbr.rel (0) target = $region33
    $region32: #{tpu_custom_call.1} parent=1 // pred_region
      %73 = dma.done [#allocation6], 96
    $region33: #{tpu_custom_call.1} parent=1 // pred_fallthru
      _
    // Predicated region
    $region34: #{tpu_custom_call.1} parent=1 // pred_check
      _
    $region35: #{tpu_custom_call.1} parent=1 // pred_check_branch
      %75 = sbr.rel (0) target = $region37
    $region36: #{tpu_custom_call.1} parent=1 // pred_region
      %77 = dma.done [#allocation9], 24576
    $region37: #{tpu_custom_call.1} parent=1 // pred_fallthru
      _
    %v78 = vld [vmem:[#allocation2] sm:$0xff]
    %v79 = vld [vmem:[#allocation2 + $0x8] sm:$0xff]
    %v80 = vld [vmem:[#allocation2 + $0x10] sm:$0xff]
    %v81 = vld [vmem:[#allocation2 + $0x18] sm:$0xff]
    %v82 = vld [vmem:[#allocation2 + $0x20] sm:$0xff]
    %v83 = vld [vmem:[#allocation2 + $0x28] sm:$0xff]
    %v84 = vadd.f32 %v78, %v79
    %v85 = vadd.f32 %v84, %v80
    %v86 = vadd.f32 %v85, %v81
    %v87 = vadd.f32 %v86, %v82
    %v88 = vadd.f32 %v87, %v83
    %89 = vadd.xlane.f32.xlu0 %v88
    %v90 = vpop.xlane.xlu0 %89
    %v91 = vmul.f32 %v90, 0.0013020834
    %v92 = vsub.f32 %v78, %v91
    %v93 = vsub.f32 %v79, %v91
    %v94 = vsub.f32 %v80, %v91
    %v95 = vsub.f32 %v81, %v91
    %v96 = vsub.f32 %v82, %v91
    %v97 = vsub.f32 %v83, %v91
    %v98 = vmul.f32 %v92, %v92
    %v99 = vmul.f32 %v93, %v93
    %v100 = vmul.f32 %v94, %v94
    %v101 = vmul.f32 %v95, %v95
    %v102 = vmul.f32 %v96, %v96
    %v103 = vmul.f32 %v97, %v97
    %v104 = vadd.f32 %v98, %v99
    %v105 = vadd.f32 %v104, %v100
    %v106 = vadd.f32 %v105, %v101
    %v107 = vadd.f32 %v106, %v102
    %v108 = vadd.f32 %v107, %v103
    %109 = vadd.xlane.f32.xlu0 %v108
    %v110 = vpop.xlane.xlu0 %109
    %v111 = vmul.f32 %v110, 0.0013020834
    %v112 = vadd.f32 %v111, 1e-05
    %v113 = vrsqrt.pop %v112
    %v114 = vmul.f32 %v113, %v112
    %v115 = vmul.f32 %v114, %v113
    %v116 = vmul.f32 0.5, %v115
    %v117 = vsub.f32 1.5, %v116
    %v118 = vmul.f32 %v113, %v117
    %vm119 = vweird.f32 %v112
    %vm120 = vweird.f32 %v113
    %vm121 = vmor %vm119, %vm120
    %v122 = vsel %vm121, %v113, %v118
    %v123 = vmul.f32 %v92, %v122
    %v124 = vmul.f32 %v93, %v122
    %v125 = vmul.f32 %v94, %v122
    %v126 = vmul.f32 %v95, %v122
    %v127 = vmul.f32 %v96, %v122
    %v128 = vmul.f32 %v97, %v122
    %v129 = vld [vmem:[#allocation5] sm:$0x3f]
    %v131 = vperm.slane %v129, 0
    %v132 = vperm.slane %v129, 1
    %v133 = vperm.slane %v129, 2
    %v134 = vperm.slane %v129, 3
    %v135 = vperm.slane %v129, 4
    %v136 = vperm.slane %v129, 5
    %v143 = vmul.f32 %v123, %v131
    %v144 = vmul.f32 %v124, %v132
    %v145 = vmul.f32 %v125, %v133
    %v146 = vmul.f32 %v126, %v134
    %v147 = vmul.f32 %v127, %v135
    %v148 = vmul.f32 %v128, %v136
    %v149 = vld [vmem:[#allocation7] sm:$0x3f]
    %v151 = vperm.slane %v149, 0
    %v152 = vperm.slane %v149, 1
    %v153 = vperm.slane %v149, 2
    %v154 = vperm.slane %v149, 3
    %v155 = vperm.slane %v149, 4
    %v156 = vperm.slane %v149, 5
    %v163 = vadd.f32 %v143, %v151
    %v164 = vadd.f32 %v144, %v152
    %v165 = vadd.f32 %v145, %v153
    %v166 = vadd.f32 %v146, %v154
    %v167 = vadd.f32 %v147, %v155
    %v168 = vadd.f32 %v148, %v156
    %v169 = vld [vmem:[#allocation8] sm:$0xff]
    %v170 = vld [vmem:[#allocation8 + $0x8] sm:$0xff]
    %v171 = vld [vmem:[#allocation8 + $0x10] sm:$0xff]
    %v172 = vld [vmem:[#allocation8 + $0x18] sm:$0xff]
    %v173 = vld [vmem:[#allocation8 + $0x20] sm:$0xff]
    %v174 = vld [vmem:[#allocation8 + $0x28] sm:$0xff]
    %v175 = vld [vmem:[#allocation8 + $0x30] sm:$0xff]
    %v176 = vld [vmem:[#allocation8 + $0x38] sm:$0xff]
    %v177 = vld [vmem:[#allocation8 + $0x40] sm:$0xff]
    %v178 = vld [vmem:[#allocation8 + $0x48] sm:$0xff]
    %v179 = vld [vmem:[#allocation8 + $0x50] sm:$0xff]
    %v180 = vld [vmem:[#allocation8 + $0x58] sm:$0xff]
    %v181 = vld [vmem:[#allocation8 + $0x60] sm:$0xff]
    %v182 = vld [vmem:[#allocation8 + $0x68] sm:$0xff]
    %v183 = vld [vmem:[#allocation8 + $0x70] sm:$0xff]
    %v184 = vld [vmem:[#allocation8 + $0x78] sm:$0xff]
    %v185 = vld [vmem:[#allocation8 + $0x80] sm:$0xff]
    %v186 = vld [vmem:[#allocation8 + $0x88] sm:$0xff]
    %v187 = vld [vmem:[#allocation8 + $0x90] sm:$0xff]
    %v188 = vld [vmem:[#allocation8 + $0x98] sm:$0xff]
    %v189 = vld [vmem:[#allocation8 + $0xa0] sm:$0xff]
    %v190 = vld [vmem:[#allocation8 + $0xa8] sm:$0xff]
    %v191 = vld [vmem:[#allocation8 + $0xb0] sm:$0xff]
    %v192 = vld [vmem:[#allocation8 + $0xb8] sm:$0xff]
    %v193 = vld [vmem:[#allocation8 + $0xc0] sm:$0xff]
    %v194 = vld [vmem:[#allocation8 + $0xc8] sm:$0xff]
    %v195 = vld [vmem:[#allocation8 + $0xd0] sm:$0xff]
    %v196 = vld [vmem:[#allocation8 + $0xd8] sm:$0xff]
    %v197 = vld [vmem:[#allocation8 + $0xe0] sm:$0xff]
    %v198 = vld [vmem:[#allocation8 + $0xe8] sm:$0xff]
    %v199 = vld [vmem:[#allocation8 + $0xf0] sm:$0xff]
    %v200 = vld [vmem:[#allocation8 + $0xf8] sm:$0xff]
    %v201 = vld [vmem:[#allocation8 + $0x100] sm:$0xff]
    %v202 = vld [vmem:[#allocation8 + $0x108] sm:$0xff]
    %v203 = vld [vmem:[#allocation8 + $0x110] sm:$0xff]
    %v204 = vld [vmem:[#allocation8 + $0x118] sm:$0xff]
    %v205 = vld [vmem:[#allocation8 + $0x120] sm:$0xff]
    %v206 = vld [vmem:[#allocation8 + $0x128] sm:$0xff]
    %v207 = vld [vmem:[#allocation8 + $0x130] sm:$0xff]
    %v208 = vld [vmem:[#allocation8 + $0x138] sm:$0xff]
    %v209 = vld [vmem:[#allocation8 + $0x140] sm:$0xff]
    %v210 = vld [vmem:[#allocation8 + $0x148] sm:$0xff]
    %v211 = vld [vmem:[#allocation8 + $0x150] sm:$0xff]
    %v212 = vld [vmem:[#allocation8 + $0x158] sm:$0xff]
    %v213 = vld [vmem:[#allocation8 + $0x160] sm:$0xff]
    %v214 = vld [vmem:[#allocation8 + $0x168] sm:$0xff]
    %v215 = vld [vmem:[#allocation8 + $0x170] sm:$0xff]
    %v216 = vld [vmem:[#allocation8 + $0x178] sm:$0xff]
    %v217 = vld [vmem:[#allocation8 + $0x180] sm:$0xff]
    %v218 = vld [vmem:[#allocation8 + $0x188] sm:$0xff]
    %v219 = vld [vmem:[#allocation8 + $0x190] sm:$0xff]
    %v220 = vld [vmem:[#allocation8 + $0x198] sm:$0xff]
    %v221 = vld [vmem:[#allocation8 + $0x1a0] sm:$0xff]
    %v222 = vld [vmem:[#allocation8 + $0x1a8] sm:$0xff]
    %v223 = vld [vmem:[#allocation8 + $0x1b0] sm:$0xff]
    %v224 = vld [vmem:[#allocation8 + $0x1b8] sm:$0xff]
    %v225 = vld [vmem:[#allocation8 + $0x1c0] sm:$0xff]
    %v226 = vld [vmem:[#allocation8 + $0x1c8] sm:$0xff]
    %v227 = vld [vmem:[#allocation8 + $0x1d0] sm:$0xff]
    %v228 = vld [vmem:[#allocation8 + $0x1d8] sm:$0xff]
    %v229 = vld [vmem:[#allocation8 + $0x1e0] sm:$0xff]
    %v230 = vld [vmem:[#allocation8 + $0x1e8] sm:$0xff]
    %v231 = vld [vmem:[#allocation8 + $0x1f0] sm:$0xff]
    %v232 = vld [vmem:[#allocation8 + $0x1f8] sm:$0xff]
    %v233 = vld [vmem:[#allocation8 + $0x200] sm:$0xff]
    %v234 = vld [vmem:[#allocation8 + $0x208] sm:$0xff]
    %v235 = vld [vmem:[#allocation8 + $0x210] sm:$0xff]
    %v236 = vld [vmem:[#allocation8 + $0x218] sm:$0xff]
    %v237 = vld [vmem:[#allocation8 + $0x220] sm:$0xff]
    %v238 = vld [vmem:[#allocation8 + $0x228] sm:$0xff]
    %v239 = vld [vmem:[#allocation8 + $0x230] sm:$0xff]
    %v240 = vld [vmem:[#allocation8 + $0x238] sm:$0xff]
    %v241 = vld [vmem:[#allocation8 + $0x240] sm:$0xff]
    %v242 = vld [vmem:[#allocation8 + $0x248] sm:$0xff]
    %v243 = vld [vmem:[#allocation8 + $0x250] sm:$0xff]
    %v244 = vld [vmem:[#allocation8 + $0x258] sm:$0xff]
    %v245 = vld [vmem:[#allocation8 + $0x260] sm:$0xff]
    %v246 = vld [vmem:[#allocation8 + $0x268] sm:$0xff]
    %v247 = vld [vmem:[#allocation8 + $0x270] sm:$0xff]
    %v248 = vld [vmem:[#allocation8 + $0x278] sm:$0xff]
    %v249 = vld [vmem:[#allocation8 + $0x280] sm:$0xff]
    %v250 = vld [vmem:[#allocation8 + $0x288] sm:$0xff]
    %v251 = vld [vmem:[#allocation8 + $0x290] sm:$0xff]
    %v252 = vld [vmem:[#allocation8 + $0x298] sm:$0xff]
    %v253 = vld [vmem:[#allocation8 + $0x2a0] sm:$0xff]
    %v254 = vld [vmem:[#allocation8 + $0x2a8] sm:$0xff]
    %v255 = vld [vmem:[#allocation8 + $0x2b0] sm:$0xff]
    %v256 = vld [vmem:[#allocation8 + $0x2b8] sm:$0xff]
    %v257 = vld [vmem:[#allocation8 + $0x2c0] sm:$0xff]
    %v258 = vld [vmem:[#allocation8 + $0x2c8] sm:$0xff]
    %v259 = vld [vmem:[#allocation8 + $0x2d0] sm:$0xff]
    %v260 = vld [vmem:[#allocation8 + $0x2d8] sm:$0xff]
    %v261 = vld [vmem:[#allocation8 + $0x2e0] sm:$0xff]
    %v262 = vld [vmem:[#allocation8 + $0x2e8] sm:$0xff]
    %v263 = vld [vmem:[#allocation8 + $0x2f0] sm:$0xff]
    %v264 = vld [vmem:[#allocation8 + $0x2f8] sm:$0xff]
    %v265 = vld [vmem:[#allocation8 + $0x300] sm:$0xff]
    %v266 = vld [vmem:[#allocation8 + $0x308] sm:$0xff]
    %v267 = vld [vmem:[#allocation8 + $0x310] sm:$0xff]
    %v268 = vld [vmem:[#allocation8 + $0x318] sm:$0xff]
    %v269 = vld [vmem:[#allocation8 + $0x320] sm:$0xff]
    %v270 = vld [vmem:[#allocation8 + $0x328] sm:$0xff]
    %v271 = vld [vmem:[#allocation8 + $0x330] sm:$0xff]
    %v272 = vld [vmem:[#allocation8 + $0x338] sm:$0xff]
    %v273 = vld [vmem:[#allocation8 + $0x340] sm:$0xff]
    %v274 = vld [vmem:[#allocation8 + $0x348] sm:$0xff]
    %v275 = vld [vmem:[#allocation8 + $0x350] sm:$0xff]
    %v276 = vld [vmem:[#allocation8 + $0x358] sm:$0xff]
    %v277 = vld [vmem:[#allocation8 + $0x360] sm:$0xff]
    %v278 = vld [vmem:[#allocation8 + $0x368] sm:$0xff]
    %v279 = vld [vmem:[#allocation8 + $0x370] sm:$0xff]
    %v280 = vld [vmem:[#allocation8 + $0x378] sm:$0xff]
    %v281 = vld [vmem:[#allocation8 + $0x380] sm:$0xff]
    %v282 = vld [vmem:[#allocation8 + $0x388] sm:$0xff]
    %v283 = vld [vmem:[#allocation8 + $0x390] sm:$0xff]
    %v284 = vld [vmem:[#allocation8 + $0x398] sm:$0xff]
    %v285 = vld [vmem:[#allocation8 + $0x3a0] sm:$0xff]
    %v286 = vld [vmem:[#allocation8 + $0x3a8] sm:$0xff]
    %v287 = vld [vmem:[#allocation8 + $0x3b0] sm:$0xff]
    %v288 = vld [vmem:[#allocation8 + $0x3b8] sm:$0xff]
    %v289 = vld [vmem:[#allocation8 + $0x3c0] sm:$0xff]
    %v290 = vld [vmem:[#allocation8 + $0x3c8] sm:$0xff]
    %v291 = vld [vmem:[#allocation8 + $0x3d0] sm:$0xff]
    %v292 = vld [vmem:[#allocation8 + $0x3d8] sm:$0xff]
    %v293 = vld [vmem:[#allocation8 + $0x3e0] sm:$0xff]
    %v294 = vld [vmem:[#allocation8 + $0x3e8] sm:$0xff]
    %v295 = vld [vmem:[#allocation8 + $0x3f0] sm:$0xff]
    %v296 = vld [vmem:[#allocation8 + $0x3f8] sm:$0xff]
    %v297 = vld [vmem:[#allocation8 + $0x400] sm:$0xff]
    %v298 = vld [vmem:[#allocation8 + $0x408] sm:$0xff]
    %v299 = vld [vmem:[#allocation8 + $0x410] sm:$0xff]
    %v300 = vld [vmem:[#allocation8 + $0x418] sm:$0xff]
    %v301 = vld [vmem:[#allocation8 + $0x420] sm:$0xff]
    %v302 = vld [vmem:[#allocation8 + $0x428] sm:$0xff]
    %v303 = vld [vmem:[#allocation8 + $0x430] sm:$0xff]
    %v304 = vld [vmem:[#allocation8 + $0x438] sm:$0xff]
    %v305 = vld [vmem:[#allocation8 + $0x440] sm:$0xff]
    %v306 = vld [vmem:[#allocation8 + $0x448] sm:$0xff]
    %v307 = vld [vmem:[#allocation8 + $0x450] sm:$0xff]
    %v308 = vld [vmem:[#allocation8 + $0x458] sm:$0xff]
    %v309 = vld [vmem:[#allocation8 + $0x460] sm:$0xff]
    %v310 = vld [vmem:[#allocation8 + $0x468] sm:$0xff]
    %v311 = vld [vmem:[#allocation8 + $0x470] sm:$0xff]
    %v312 = vld [vmem:[#allocation8 + $0x478] sm:$0xff]
    %v313 = vld [vmem:[#allocation8 + $0x480] sm:$0xff]
    %v314 = vld [vmem:[#allocation8 + $0x488] sm:$0xff]
    %v315 = vld [vmem:[#allocation8 + $0x490] sm:$0xff]
    %v316 = vld [vmem:[#allocation8 + $0x498] sm:$0xff]
    %v317 = vld [vmem:[#allocation8 + $0x4a0] sm:$0xff]
    %v318 = vld [vmem:[#allocation8 + $0x4a8] sm:$0xff]
    %v319 = vld [vmem:[#allocation8 + $0x4b0] sm:$0xff]
    %v320 = vld [vmem:[#allocation8 + $0x4b8] sm:$0xff]
    %v321 = vld [vmem:[#allocation8 + $0x4c0] sm:$0xff]
    %v322 = vld [vmem:[#allocation8 + $0x4c8] sm:$0xff]
    %v323 = vld [vmem:[#allocation8 + $0x4d0] sm:$0xff]
    %v324 = vld [vmem:[#allocation8 + $0x4d8] sm:$0xff]
    %v325 = vld [vmem:[#allocation8 + $0x4e0] sm:$0xff]
    %v326 = vld [vmem:[#allocation8 + $0x4e8] sm:$0xff]
    %v327 = vld [vmem:[#allocation8 + $0x4f0] sm:$0xff]
    %v328 = vld [vmem:[#allocation8 + $0x4f8] sm:$0xff]
    %v329 = vld [vmem:[#allocation8 + $0x500] sm:$0xff]
    %v330 = vld [vmem:[#allocation8 + $0x508] sm:$0xff]
    %v331 = vld [vmem:[#allocation8 + $0x510] sm:$0xff]
    %v332 = vld [vmem:[#allocation8 + $0x518] sm:$0xff]
    %v333 = vld [vmem:[#allocation8 + $0x520] sm:$0xff]
    %v334 = vld [vmem:[#allocation8 + $0x528] sm:$0xff]
    %v335 = vld [vmem:[#allocation8 + $0x530] sm:$0xff]
    %v336 = vld [vmem:[#allocation8 + $0x538] sm:$0xff]
    %v337 = vld [vmem:[#allocation8 + $0x540] sm:$0xff]
    %v338 = vld [vmem:[#allocation8 + $0x548] sm:$0xff]
    %v339 = vld [vmem:[#allocation8 + $0x550] sm:$0xff]
    %v340 = vld [vmem:[#allocation8 + $0x558] sm:$0xff]
    %v341 = vld [vmem:[#allocation8 + $0x560] sm:$0xff]
    %v342 = vld [vmem:[#allocation8 + $0x568] sm:$0xff]
    %v343 = vld [vmem:[#allocation8 + $0x570] sm:$0xff]
    %v344 = vld [vmem:[#allocation8 + $0x578] sm:$0xff]
    %v345 = vld [vmem:[#allocation8 + $0x580] sm:$0xff]
    %v346 = vld [vmem:[#allocation8 + $0x588] sm:$0xff]
    %v347 = vld [vmem:[#allocation8 + $0x590] sm:$0xff]
    %v348 = vld [vmem:[#allocation8 + $0x598] sm:$0xff]
    %v349 = vld [vmem:[#allocation8 + $0x5a0] sm:$0xff]
    %v350 = vld [vmem:[#allocation8 + $0x5a8] sm:$0xff]
    %v351 = vld [vmem:[#allocation8 + $0x5b0] sm:$0xff]
    %v352 = vld [vmem:[#allocation8 + $0x5b8] sm:$0xff]
    %v353 = vld [vmem:[#allocation8 + $0x5c0] sm:$0xff]
    %v354 = vld [vmem:[#allocation8 + $0x5c8] sm:$0xff]
    %v355 = vld [vmem:[#allocation8 + $0x5d0] sm:$0xff]
    %v356 = vld [vmem:[#allocation8 + $0x5d8] sm:$0xff]
    %v357 = vld [vmem:[#allocation8 + $0x5e0] sm:$0xff]
    %v358 = vld [vmem:[#allocation8 + $0x5e8] sm:$0xff]
    %v359 = vld [vmem:[#allocation8 + $0x5f0] sm:$0xff]
    %v360 = vld [vmem:[#allocation8 + $0x5f8] sm:$0xff]
    %v361 = vld [vmem:[%s4] sm:$0x3]
    %v363 = vperm.slane %v361, 0
    %v364 = vperm.slane %v361, 1
    %367 = vmatpush.msra.mxu0 %v199
    %368 = vmatpush.msra.mxu0 %v197
    %369 = vmatpush.msra.mxu0 %v195
    %370 = vmatpush.msra.mxu0 %v193
    %371 = vmatpush.msra.mxu0 %v191
    %372 = vmatpush.msra.mxu0 %v189
    %373 = vmatpush.msra.mxu0 %v187
    %374 = vmatpush.msra.mxu0 %v185
    %375 = vmatpush.msra.mxu0 %v183
    %376 = vmatpush.msra.mxu0 %v181
    %377 = vmatpush.msra.mxu0 %v179
    %378 = vmatpush.msra.mxu0 %v177
    %379 = vmatpush.msra.mxu0 %v175
    %380 = vmatpush.msra.mxu0 %v173
    %381 = vmatpush.msra.mxu0 %v171
    %382 = vmatpush.msra.mxu0 %v169
    %383 = vmatmul.f32.gmra.mxu0 %v163
    %v384 = vpop.f32.mrf.mxu0
    %v385 = vadd.f32 %v363, %v384
    %386 = vdwg.mxu0
    %387 = vmatpush.msra.mxu0 %v231
    %388 = vmatpush.msra.mxu0 %v229
    %389 = vmatpush.msra.mxu0 %v227
    %390 = vmatpush.msra.mxu0 %v225
    %391 = vmatpush.msra.mxu0 %v223
    %392 = vmatpush.msra.mxu0 %v221
    %393 = vmatpush.msra.mxu0 %v219
    %394 = vmatpush.msra.mxu0 %v217
    %395 = vmatpush.msra.mxu0 %v215
    %396 = vmatpush.msra.mxu0 %v213
    %397 = vmatpush.msra.mxu0 %v211
    %398 = vmatpush.msra.mxu0 %v209
    %399 = vmatpush.msra.mxu0 %v207
    %400 = vmatpush.msra.mxu0 %v205
    %401 = vmatpush.msra.mxu0 %v203
    %402 = vmatpush.msra.mxu0 %v201
    %403 = vmatmul.f32.gmra.mxu0 %v164
    %v404 = vpop.f32.mrf.mxu0
    %v405 = vadd.f32 %v385, %v404
    %406 = vdwg.mxu0
    %407 = vmatpush.msra.mxu0 %v263
    %408 = vmatpush.msra.mxu0 %v261
    %409 = vmatpush.msra.mxu0 %v259
    %410 = vmatpush.msra.mxu0 %v257
    %411 = vmatpush.msra.mxu0 %v255
    %412 = vmatpush.msra.mxu0 %v253
    %413 = vmatpush.msra.mxu0 %v251
    %414 = vmatpush.msra.mxu0 %v249
    %415 = vmatpush.msra.mxu0 %v247
    %416 = vmatpush.msra.mxu0 %v245
    %417 = vmatpush.msra.mxu0 %v243
    %418 = vmatpush.msra.mxu0 %v241
    %419 = vmatpush.msra.mxu0 %v239
    %420 = vmatpush.msra.mxu0 %v237
    %421 = vmatpush.msra.mxu0 %v235
    %422 = vmatpush.msra.mxu0 %v233
    %423 = vmatmul.f32.gmra.mxu0 %v165
    %v424 = vpop.f32.mrf.mxu0
    %v425 = vadd.f32 %v405, %v424
    %426 = vdwg.mxu0
    %427 = vmatpush.msra.mxu0 %v295
    %428 = vmatpush.msra.mxu0 %v293
    %429 = vmatpush.msra.mxu0 %v291
    %430 = vmatpush.msra.mxu0 %v289
    %431 = vmatpush.msra.mxu0 %v287
    %432 = vmatpush.msra.mxu0 %v285
    %433 = vmatpush.msra.mxu0 %v283
    %434 = vmatpush.msra.mxu0 %v281
    %435 = vmatpush.msra.mxu0 %v279
    %436 = vmatpush.msra.mxu0 %v277
    %437 = vmatpush.msra.mxu0 %v275
    %438 = vmatpush.msra.mxu0 %v273
    %439 = vmatpush.msra.mxu0 %v271
    %440 = vmatpush.msra.mxu0 %v269
    %441 = vmatpush.msra.mxu0 %v267
    %442 = vmatpush.msra.mxu0 %v265
    %443 = vmatmul.f32.gmra.mxu0 %v166
    %v444 = vpop.f32.mrf.mxu0
    %v445 = vadd.f32 %v425, %v444
    %446 = vdwg.mxu0
    %447 = vmatpush.msra.mxu0 %v327
    %448 = vmatpush.msra.mxu0 %v325
    %449 = vmatpush.msra.mxu0 %v323
    %450 = vmatpush.msra.mxu0 %v321
    %451 = vmatpush.msra.mxu0 %v319
    %452 = vmatpush.msra.mxu0 %v317
    %453 = vmatpush.msra.mxu0 %v315
    %454 = vmatpush.msra.mxu0 %v313
    %455 = vmatpush.msra.mxu0 %v311
    %456 = vmatpush.msra.mxu0 %v309
    %457 = vmatpush.msra.mxu0 %v307
    %458 = vmatpush.msra.mxu0 %v305
    %459 = vmatpush.msra.mxu0 %v303
    %460 = vmatpush.msra.mxu0 %v301
    %461 = vmatpush.msra.mxu0 %v299
    %462 = vmatpush.msra.mxu0 %v297
    %463 = vmatmul.f32.gmra.mxu0 %v167
    %v464 = vpop.f32.mrf.mxu0
    %v465 = vadd.f32 %v445, %v464
    %466 = vdwg.mxu0
    %467 = vmatpush.msra.mxu0 %v359
    %468 = vmatpush.msra.mxu0 %v357
    %469 = vmatpush.msra.mxu0 %v355
    %470 = vmatpush.msra.mxu0 %v353
    %471 = vmatpush.msra.mxu0 %v351
    %472 = vmatpush.msra.mxu0 %v349
    %473 = vmatpush.msra.mxu0 %v347
    %474 = vmatpush.msra.mxu0 %v345
    %475 = vmatpush.msra.mxu0 %v343
    %476 = vmatpush.msra.mxu0 %v341
    %477 = vmatpush.msra.mxu0 %v339
    %478 = vmatpush.msra.mxu0 %v337
    %479 = vmatpush.msra.mxu0 %v335
    %480 = vmatpush.msra.mxu0 %v333
    %481 = vmatpush.msra.mxu0 %v331
    %482 = vmatpush.msra.mxu0 %v329
    %483 = vmatmul.f32.gmra.mxu0 %v168
    %v484 = vpop.f32.mrf.mxu0
    %v485 = vadd.f32 %v465, %v484
    %486 = vdwg.mxu0
    %487 = vmatpush.msra.mxu0 %v200
    %488 = vmatpush.msra.mxu0 %v198
    %489 = vmatpush.msra.mxu0 %v196
    %490 = vmatpush.msra.mxu0 %v194
    %491 = vmatpush.msra.mxu0 %v192
    %492 = vmatpush.msra.mxu0 %v190
    %493 = vmatpush.msra.mxu0 %v188
    %494 = vmatpush.msra.mxu0 %v186
    %495 = vmatpush.msra.mxu0 %v184
    %496 = vmatpush.msra.mxu0 %v182
    %497 = vmatpush.msra.mxu0 %v180
    %498 = vmatpush.msra.mxu0 %v178
    %499 = vmatpush.msra.mxu0 %v176
    %500 = vmatpush.msra.mxu0 %v174
    %501 = vmatpush.msra.mxu0 %v172
    %502 = vmatpush.msra.mxu0 %v170
    %503 = vmatmul.f32.gmra.mxu0 %v163
    %v504 = vpop.f32.mrf.mxu0
    %v505 = vadd.f32 %v364, %v504
    %506 = vdwg.mxu0
    %507 = vmatpush.msra.mxu0 %v232
    %508 = vmatpush.msra.mxu0 %v230
    %509 = vmatpush.msra.mxu0 %v228
    %510 = vmatpush.msra.mxu0 %v226
    %511 = vmatpush.msra.mxu0 %v224
    %512 = vmatpush.msra.mxu0 %v222
    %513 = vmatpush.msra.mxu0 %v220
    %514 = vmatpush.msra.mxu0 %v218
    %515 = vmatpush.msra.mxu0 %v216
    %516 = vmatpush.msra.mxu0 %v214
    %517 = vmatpush.msra.mxu0 %v212
    %518 = vmatpush.msra.mxu0 %v210
    %519 = vmatpush.msra.mxu0 %v208
    %520 = vmatpush.msra.mxu0 %v206
    %521 = vmatpush.msra.mxu0 %v204
    %522 = vmatpush.msra.mxu0 %v202
    %523 = vmatmul.f32.gmra.mxu0 %v164
    %v524 = vpop.f32.mrf.mxu0
    %v525 = vadd.f32 %v505, %v524
    %526 = vdwg.mxu0
    %527 = vmatpush.msra.mxu0 %v264
    %528 = vmatpush.msra.mxu0 %v262
    %529 = vmatpush.msra.mxu0 %v260
    %530 = vmatpush.msra.mxu0 %v258
    %531 = vmatpush.msra.mxu0 %v256
    %532 = vmatpush.msra.mxu0 %v254
    %533 = vmatpush.msra.mxu0 %v252
    %534 = vmatpush.msra.mxu0 %v250
    %535 = vmatpush.msra.mxu0 %v248
    %536 = vmatpush.msra.mxu0 %v246
    %537 = vmatpush.msra.mxu0 %v244
    %538 = vmatpush.msra.mxu0 %v242
    %539 = vmatpush.msra.mxu0 %v240
    %540 = vmatpush.msra.mxu0 %v238
    %541 = vmatpush.msra.mxu0 %v236
    %542 = vmatpush.msra.mxu0 %v234
    %543 = vmatmul.f32.gmra.mxu0 %v165
    %v544 = vpop.f32.mrf.mxu0
    %v545 = vadd.f32 %v525, %v544
    %546 = vdwg.mxu0
    %547 = vmatpush.msra.mxu0 %v296
    %548 = vmatpush.msra.mxu0 %v294
    %549 = vmatpush.msra.mxu0 %v292
    %550 = vmatpush.msra.mxu0 %v290
    %551 = vmatpush.msra.mxu0 %v288
    %552 = vmatpush.msra.mxu0 %v286
    %553 = vmatpush.msra.mxu0 %v284
    %554 = vmatpush.msra.mxu0 %v282
    %555 = vmatpush.msra.mxu0 %v280
    %556 = vmatpush.msra.mxu0 %v278
    %557 = vmatpush.msra.mxu0 %v276
    %558 = vmatpush.msra.mxu0 %v274
    %559 = vmatpush.msra.mxu0 %v272
    %560 = vmatpush.msra.mxu0 %v270
    %561 = vmatpush.msra.mxu0 %v268
    %562 = vmatpush.msra.mxu0 %v266
    %563 = vmatmul.f32.gmra.mxu0 %v166
    %v564 = vpop.f32.mrf.mxu0
    %v565 = vadd.f32 %v545, %v564
    %566 = vdwg.mxu0
    %567 = vmatpush.msra.mxu0 %v328
    %568 = vmatpush.msra.mxu0 %v326
    %569 = vmatpush.msra.mxu0 %v324
    %570 = vmatpush.msra.mxu0 %v322
    %571 = vmatpush.msra.mxu0 %v320
    %572 = vmatpush.msra.mxu0 %v318
    %573 = vmatpush.msra.mxu0 %v316
    %574 = vmatpush.msra.mxu0 %v314
    %575 = vmatpush.msra.mxu0 %v312
    %576 = vmatpush.msra.mxu0 %v310
    %577 = vmatpush.msra.mxu0 %v308
    %578 = vmatpush.msra.mxu0 %v306
    %579 = vmatpush.msra.mxu0 %v304
    %580 = vmatpush.msra.mxu0 %v302
    %581 = vmatpush.msra.mxu0 %v300
    %582 = vmatpush.msra.mxu0 %v298
    %583 = vmatmul.f32.gmra.mxu0 %v167
    %v584 = vpop.f32.mrf.mxu0
    %v585 = vadd.f32 %v565, %v584
    %586 = vdwg.mxu0
    %587 = vmatpush.msra.mxu0 %v360
    %588 = vmatpush.msra.mxu0 %v358
    %589 = vmatpush.msra.mxu0 %v356
    %590 = vmatpush.msra.mxu0 %v354
    %591 = vmatpush.msra.mxu0 %v352
    %592 = vmatpush.msra.mxu0 %v350
    %593 = vmatpush.msra.mxu0 %v348
    %594 = vmatpush.msra.mxu0 %v346
    %595 = vmatpush.msra.mxu0 %v344
    %596 = vmatpush.msra.mxu0 %v342
    %597 = vmatpush.msra.mxu0 %v340
    %598 = vmatpush.msra.mxu0 %v338
    %599 = vmatpush.msra.mxu0 %v336
    %600 = vmatpush.msra.mxu0 %v334
    %601 = vmatpush.msra.mxu0 %v332
    %602 = vmatpush.msra.mxu0 %v330
    %603 = vmatmul.f32.gmra.mxu0 %v168
    %v604 = vpop.f32.mrf.mxu0
    %v605 = vadd.f32 %v585, %v604
    %606 = vdwg.mxu0
    %607 = vst [vmem:[#allocation10] sm:$0xff] %v485
    %608 = vst [vmem:[#allocation10 + $0x8] sm:$0xff] %v605
    // Predicated region
    $region38: #{tpu_custom_call.1} parent=1 // pred_check
      _
    $region39: #{tpu_custom_call.1} parent=1 // pred_check_branch
      %610 = sbr.rel (0) target = $region41
    $region40: #{tpu_custom_call.1} parent=1 // pred_region
      %612 = vsyncadd [#allocation4], 0
      %s614 = sshll.u32 [#allocation10], 4
      %s615 = int_to_ptr.vmem [resolvable:$true] %s614
      %s616 = sshll.u32 %s5, 4
      %s617 = int_to_ptr.hbm [resolvable:$true] %s616
      %619 = dma.vmem_to_hbm [thread:$0]  %s615, 256, %s617, [#allocation4]
    $region41: #{tpu_custom_call.1} parent=1 // pred_fallthru
      _
    // Predicated region
    $region42: #{tpu_custom_call.1} parent=1 // pred_check
      _
    $region43: #{tpu_custom_call.1} parent=1 // pred_check_branch
      %621 = sbr.rel (0) target = $region45
    $region44: #{tpu_custom_call.1} parent=1 // pred_region
      %623 = dma.done [#allocation4], 256
    $region45: #{tpu_custom_call.1} parent=1 // pred_fallthru
      _
    %624 = vsyncpa [#allocation3], 1
    %625 = vsyncpa [#allocation6], 1
    %626 = vsyncpa [#allocation9], 1
    %627 = vsyncpa [#allocation4], 1

</llo_original>
